<compile_context>
chip_gen: v7x
topology: tpu7x:2x2x1
jax: 0.10.0
libtpu: 0.0.40
codegen_flags: <defaults>
</compile_context>

<pallas_src>
import math
from functools import partial

import jax
import jax.numpy as jnp
from jax.experimental import pallas as pl
from jax.experimental.pallas import tpu as pltpu


def _round_up(v: int, m: int) -> int:
    return ((v + m - 1) // m) * m


# ---------------------------------------------------------------------------
# Device-aware tile plan.
#   Conservative defaults sized for v7x (64 MiB physical / 32 MiB scoped VMEM);
#   on 128 MiB-VMEM parts (v5e/v6e) use larger tiles (fewer grid steps, longer
#   weight DMAs) and raise the scoped VMEM limit accordingly.
# ---------------------------------------------------------------------------
def _detect_tiles():
    try:
        info = pltpu.get_tpu_info()
        vmem_bytes = int(getattr(info, "vmem_capacity_bytes", 64 << 20))
    except Exception:
        vmem_bytes = 64 << 20
    if vmem_bytes >= (96 << 20):          # v5e / v6e (128 MiB VMEM)
        return 1024, 2048, 96 << 20       # TILE_N, TILE_K, vmem_limit_bytes
    return 512, 1024, None                # v7x-safe plan, default scoped limit


TILE_N, TILE_K, _VMEM_LIMIT_BYTES = _detect_tiles()
TILE_B = 256                  # batch tile: bounds VMEM growth, >=256-row MXU LHS
_FAST_PATH_BYTES = 6 << 20    # single-block (no-grid) path threshold


def _pick_tile(total128: int, cap: int, want_multi: bool) -> int:
    """Largest multiple of 128 <= cap that divides `total128` (a 128-multiple).
    If want_multi, also try to leave >=2 blocks so the 'parallel' axis can be
    split across v7x's two TensorCores. Falls back to 128."""
    upper = total128 // 2 if (want_multi and total128 >= 256) else total128
    upper = min(cap, upper)
    t = max(128, (upper // 128) * 128)
    while t > 128 and total128 % t != 0:
        t -= 128
    return t


def _tile_plan(K: int, N: int):
    k_pad = _round_up(K, 128)
    n_pad = _round_up(N, 128)
    tk = _pick_tile(k_pad, TILE_K, want_multi=False)
    tn = _pick_tile(n_pad, TILE_N, want_multi=True)
    return tk, tn, k_pad, n_pad


# ---------------------------------------------------------------------------
# Kernels
#   Weights are pre-transposed [K, N]; contraction is x[B,TK] @ w[TK,TN].
#   Training uses the factorized-noise identity
#     x @ (Wmu + Wsig*(eout⊗ein)).T = x @ Wmu.T + eout ⊙ ((x*ein) @ Wsig.T)
# ---------------------------------------------------------------------------
def _train_small_kernel(x_ref, wmu_ref, wsig_ref, ein_ref, eout_ref,
                        bmu_ref, bsig_ref, beps_ref, o_ref):
    x = x_ref[...]
    acc_mu = jnp.dot(x, wmu_ref[...], preferred_element_type=jnp.float32)
    acc_sig = jnp.dot(x * ein_ref[...], wsig_ref[...],
                      preferred_element_type=jnp.float32)
    bias = bmu_ref[...] + bsig_ref[...] * beps_ref[...]          # (1, N)
    o_ref[...] = (acc_mu + acc_sig * eout_ref[...] + bias).astype(o_ref.dtype)


def _eval_small_kernel(x_ref, wmu_ref, bmu_ref, o_ref):
    o_ref[...] = (jnp.dot(x_ref[...], wmu_ref[...],
                          preferred_element_type=jnp.float32)
                  + bmu_ref[...]).astype(o_ref.dtype)


def _train_tiled_kernel(x_ref, wmu_ref, wsig_ref, ein_ref, eout_ref,
                        bmu_ref, bsig_ref, beps_ref, o_ref,
                        acc_mu_ref, acc_sig_ref):
    k = pl.program_id(2)

    @pl.when(k == 0)
    def _():
        acc_mu_ref[...] = jnp.zeros_like(acc_mu_ref)
        acc_sig_ref[...] = jnp.zeros_like(acc_sig_ref)

    x = x_ref[...]
    acc_mu_ref[...] += jnp.dot(x, wmu_ref[...],
                               preferred_element_type=jnp.float32)
    acc_sig_ref[...] += jnp.dot(x * ein_ref[...], wsig_ref[...],
                                preferred_element_type=jnp.float32)

    @pl.when(k == pl.num_programs(2) - 1)
    def _():
        bias = bmu_ref[...] + bsig_ref[...] * beps_ref[...]       # (1, TN)
        o_ref[...] = (acc_mu_ref[...] + acc_sig_ref[...] * eout_ref[...]
                      + bias).astype(o_ref.dtype)


def _eval_tiled_kernel(x_ref, wmu_ref, bmu_ref, o_ref, acc_ref):
    k = pl.program_id(2)

    @pl.when(k == 0)
    def _():
        acc_ref[...] = jnp.zeros_like(acc_ref)

    acc_ref[...] += jnp.dot(x_ref[...], wmu_ref[...],
                            preferred_element_type=jnp.float32)

    @pl.when(k == pl.num_programs(2) - 1)
    def _():
        o_ref[...] = (acc_ref[...] + bmu_ref[...]).astype(o_ref.dtype)


# ---------------------------------------------------------------------------
# Wrapper
# ---------------------------------------------------------------------------
@partial(jax.jit, static_argnames=("out_features", "training"))
def noisy_linear_forward(x, packed, out_features: int, training: bool = True):
    """Pallas implementation of NoisyLinear.forward (PyTorch F.linear semantics).

    `packed` comes from pack_noisy_linear(): weights pre-transposed to [K, N] and
    pre-padded (padding hoisted out of the per-call path)."""
    B, K = x.shape
    N = out_features
    dtype = x.dtype

    tk, tn, k_pad, n_pad = _tile_plan(K, N)
    assert packed["weight_mu_t"].shape == (k_pad, n_pad), (
        "packed params do not match this layer / tile plan; rerun pack_noisy_linear")

    tb = min(TILE_B, _round_up(B, 8))
    b_pad = _round_up(B, tb)

    if b_pad != B or k_pad != K:
        x_p = jnp.pad(x, ((0, b_pad - B), (0, k_pad - K)))
    else:
        x_p = x

    n_w = 2 if training else 1

    # -------- Single-block fast path (typical Rainbow-DQN layer sizes) --------
    footprint = 4 * (b_pad * k_pad + b_pad * n_pad
                     + n_w * k_pad * n_pad + 4 * (k_pad + n_pad))
    if footprint <= _FAST_PATH_BYTES:
        if training:
            operands = (x_p, packed["weight_mu_t"], packed["weight_sigma_t"],
                        packed["eps_in"], packed["eps_out"],
                        packed["bias_mu"], packed["bias_sigma"],
                        packed["bias_epsilon"])
            kernel = _train_small_kernel
        else:
            operands = (x_p, packed["weight_mu_t"], packed["bias_mu"])
            kernel = _eval_small_kernel
        out_padded = pl.pallas_call(
            kernel,
            out_shape=jax.ShapeDtypeStruct((b_pad, n_pad), dtype),
        )(*operands)
        return out_padded[:B, :N]

    # ------------------------------ Tiled path --------------------------------
    grid = (b_pad // tb, n_pad // tn, k_pad // tk)
    nb, nj, nk = grid

    x_spec = pl.BlockSpec((tb, tk), lambda b, j, k: (b, k))
    w_spec = pl.BlockSpec((tk, tn), lambda b, j, k: (k, j))
    row_k_spec = pl.BlockSpec((1, tk), lambda b, j, k: (0, k))
    row_n_spec = pl.BlockSpec((1, tn), lambda b, j, k: (0, j))
    out_spec = pl.BlockSpec((tb, tn), lambda b, j, k: (b, j))

    if training:
        operands = (x_p, packed["weight_mu_t"], packed["weight_sigma_t"],
                    packed["eps_in"], packed["eps_out"],
                    packed["bias_mu"], packed["bias_sigma"],
                    packed["bias_epsilon"])
        in_specs = [x_spec, w_spec, w_spec, row_k_spec, row_n_spec,
                    row_n_spec, row_n_spec, row_n_spec]
        kernel = _train_tiled_kernel
        scratch = [pltpu.VMEM((tb, tn), jnp.float32),
                   pltpu.VMEM((tb, tn), jnp.float32)]
    else:
        operands = (x_p, packed["weight_mu_t"], packed["bias_mu"])
        in_specs = [x_spec, w_spec, row_n_spec]
        kernel = _eval_tiled_kernel
        scratch = [pltpu.VMEM((tb, tn), jnp.float32)]

    cost = pl.CostEstimate(
        flops=2 * n_w * b_pad * n_pad * k_pad,
        transcendentals=0,
        bytes_accessed=4 * (nj * b_pad * k_pad            # x re-read per N block
                            + nb * n_w * n_pad * k_pad    # weights re-read per B blk
                            + b_pad * n_pad               # output write
                            + 4 * (n_pad + k_pad)),       # eps / bias rows
    )

    cp_kwargs = dict(dimension_semantics=("parallel", "parallel", "arbitrary"))
    if _VMEM_LIMIT_BYTES is not None:
        cp_kwargs["vmem_limit_bytes"] = _VMEM_LIMIT_BYTES

    out_padded = pl.pallas_call(
        kernel,
        out_shape=jax.ShapeDtypeStruct((b_pad, n_pad), dtype),
        grid_spec=pltpu.PrefetchScalarGridSpec(
            num_scalar_prefetch=0,
            grid=grid,
            in_specs=in_specs,
            out_specs=out_spec,
            scratch_shapes=scratch,
        ),
        compiler_params=pltpu.CompilerParams(**cp_kwargs),
        cost_estimate=cost,
    )(*operands)

    return out_padded[:B, :N]


# ---------------------------------------------------------------------------
# Parameter / noise initialization (mirrors the PyTorch module exactly)
# ---------------------------------------------------------------------------
def _scale_noise(key, size):
    x = jax.random.normal(key, (size,), dtype=jnp.float32)
    return jnp.sign(x) * jnp.sqrt(jnp.abs(x))


def init_noisy_linear(key, in_features, out_features, std_init=0.5):
    """PyTorch-layout parameters with factorized noise
    (weight_epsilon = eps_out ⊗ eps_in, bias_epsilon = eps_out)."""
    k_wmu, k_bmu, k_ein, k_eout = jax.random.split(key, 4)
    mu_range = 1.0 / math.sqrt(in_features)

    weight_mu = jax.random.uniform(
        k_wmu, (out_features, in_features), minval=-mu_range, maxval=mu_range,
        dtype=jnp.float32)
    weight_sigma = jnp.full((out_features, in_features),
                            std_init / math.sqrt(in_features), dtype=jnp.float32)
    bias_mu = jax.random.uniform(
        k_bmu, (out_features,), minval=-mu_range, maxval=mu_range,
        dtype=jnp.float32)
    bias_sigma = jnp.full((out_features,),
                          std_init / math.sqrt(out_features), dtype=jnp.float32)

    eps_in = _scale_noise(k_ein, in_features)
    eps_out = _scale_noise(k_eout, out_features)

    return dict(weight_mu=weight_mu, weight_sigma=weight_sigma,
                bias_mu=bias_mu, bias_sigma=bias_sigma,
                weight_eps_in=eps_in, weight_eps_out=eps_out,
                bias_epsilon=eps_out)


def pack_noisy_linear(params):
    """One-time layout prep (hoisted out of forward): transpose weights to [K, N]
    (relayout-free MXU contraction) and pre-pad everything to the lane-dense tile
    plan, so no per-call HBM pad copies of the weight stream are made."""
    N, K = params["weight_mu"].shape
    _, _, k_pad, n_pad = _tile_plan(K, N)

    def pad_kn(w):                      # [N, K] -> padded [k_pad, n_pad]
        return jnp.pad(w.T, ((0, k_pad - K), (0, n_pad - N)))

    def pad_row(v, total):              # [L] -> [1, total]
        return jnp.pad(v, (0, total - v.shape[0])).reshape(1, total)

    return dict(
        weight_mu_t=pad_kn(params["weight_mu"]),
        weight_sigma_t=pad_kn(params["weight_sigma"]),
        eps_in=pad_row(params["weight_eps_in"], k_pad),
        eps_out=pad_row(params["weight_eps_out"], n_pad),
        bias_mu=pad_row(params["bias_mu"], n_pad),
        bias_sigma=pad_row(params["bias_sigma"], n_pad),
        bias_epsilon=pad_row(params["bias_epsilon"], n_pad),
    )


# ---------------------------------------------------------------------------
# Pure-JAX reference (uses the dense epsilon, exactly like PyTorch's buffer)
# ---------------------------------------------------------------------------
def noisy_linear_ref(x, p, training=True):
    if training:
        weight_epsilon = jnp.outer(p["weight_eps_out"], p["weight_eps_in"])
        w = p["weight_mu"] + p["weight_sigma"] * weight_epsilon
        b = p["bias_mu"] + p["bias_sigma"] * p["bias_epsilon"]
    else:
        w = p["weight_mu"]
        b = p["bias_mu"]
    return x @ w.T + b


if __name__ == "__main__":
    key = jax.random.PRNGKey(0)
    keys = jax.random.split(key, 6)

    def check(B, K, N, kp, kx, name):
        raw = init_noisy_linear(kp, K, N, std_init=0.5)
        packed = pack_noisy_linear(raw)
        x = jax.random.normal(kx, (B, K), dtype=jnp.float32)

        out_tr = jax.block_until_ready(
            noisy_linear_forward(x, packed, out_features=N, training=True))
        ref_tr = noisy_linear_ref(x, raw, training=True)
        assert jnp.allclose(out_tr, ref_tr, atol=1e-5, rtol=1e-5), f"train mismatch ({name})"

        out_ev = jax.block_until_ready(
            noisy_linear_forward(x, packed, out_features=N, training=False))
        ref_ev = noisy_linear_ref(x, raw, training=False)
        assert jnp.allclose(out_ev, ref_ev, atol=1e-5, rtol=1e-5), f"eval mismatch ({name})"

    # Case 1: small Rainbow-DQN-style layer (single-block fast path, full (8,128) padding).
    check(2, 32, 16, keys[0], keys[1], "small")

    # Case 2: odd, non-aligned shapes (padding + output slicing; still fast path).
    check(5, 100, 24, keys[2], keys[3], "odd")

    # Case 3: layer large enough to take the tiled/pipelined path
    # (multi-block parallel N axis, K-reduction accumulator, output slicing).
    check(96, 1100, 700, keys[4], keys[5], "tiled")

    print("KERNEL_OK")
</pallas_src>

<mosaic_0001>
module attributes {stable_mosaic.version = 11 : i64} {
  func.func @_train_small_kernel(%arg0: memref<8x128xf32, #tpu.memory_space<vmem>>, %arg1: memref<128x128xf32, #tpu.memory_space<vmem>>, %arg2: memref<128x128xf32, #tpu.memory_space<vmem>>, %arg3: memref<1x128xf32, #tpu.memory_space<vmem>>, %arg4: memref<1x128xf32, #tpu.memory_space<vmem>>, %arg5: memref<1x128xf32, #tpu.memory_space<vmem>>, %arg6: memref<1x128xf32, #tpu.memory_space<vmem>>, %arg7: memref<1x128xf32, #tpu.memory_space<vmem>>, %arg8: memref<8x128xf32, #tpu.memory_space<vmem>>) attributes {dimension_semantics = [], scalar_prefetch = 0 : i64, scratch_operands = 0 : i64, tpu.core_type = #tpu.core_type<tc>} {
    %c0 = arith.constant 0 : index
    %c0_0 = arith.constant 0 : index
    %0 = vector.load %arg0[%c0, %c0_0] : memref<8x128xf32, #tpu.memory_space<vmem>>, vector<8x128xf32>
    %c0_1 = arith.constant 0 : index
    %c0_2 = arith.constant 0 : index
    %1 = vector.load %arg1[%c0_1, %c0_2] : memref<128x128xf32, #tpu.memory_space<vmem>>, vector<128x128xf32>
    %cst = arith.constant dense<0.000000e+00> : vector<8x128xf32>
    %2 = tpu.matmul %0, %1, %cst {dimension_numbers = #tpu.dot_dimension_numbers<[1], [0], [0], [1], [0, 0, 1, 1], [], []>} : vector<8x128xf32>, vector<128x128xf32>, vector<8x128xf32> -> vector<8x128xf32>
    %c0_3 = arith.constant 0 : index
    %c0_4 = arith.constant 0 : index
    %3 = vector.load %arg3[%c0_3, %c0_4] : memref<1x128xf32, #tpu.memory_space<vmem>>, vector<1x128xf32>
    %4 = vector.broadcast %3 : vector<1x128xf32> to vector<8x128xf32>
    %5 = arith.mulf %0, %4 : vector<8x128xf32>
    %c0_5 = arith.constant 0 : index
    %c0_6 = arith.constant 0 : index
    %6 = vector.load %arg2[%c0_5, %c0_6] : memref<128x128xf32, #tpu.memory_space<vmem>>, vector<128x128xf32>
    %cst_7 = arith.constant dense<0.000000e+00> : vector<8x128xf32>
    %7 = tpu.matmul %5, %6, %cst_7 {dimension_numbers = #tpu.dot_dimension_numbers<[1], [0], [0], [1], [0, 0, 1, 1], [], []>} : vector<8x128xf32>, vector<128x128xf32>, vector<8x128xf32> -> vector<8x128xf32>
    %c0_8 = arith.constant 0 : index
    %c0_9 = arith.constant 0 : index
    %8 = vector.load %arg5[%c0_8, %c0_9] : memref<1x128xf32, #tpu.memory_space<vmem>>, vector<1x128xf32>
    %c0_10 = arith.constant 0 : index
    %c0_11 = arith.constant 0 : index
    %9 = vector.load %arg6[%c0_10, %c0_11] : memref<1x128xf32, #tpu.memory_space<vmem>>, vector<1x128xf32>
    %c0_12 = arith.constant 0 : index
    %c0_13 = arith.constant 0 : index
    %10 = vector.load %arg7[%c0_12, %c0_13] : memref<1x128xf32, #tpu.memory_space<vmem>>, vector<1x128xf32>
    %11 = arith.mulf %9, %10 : vector<1x128xf32>
    %12 = arith.addf %8, %11 : vector<1x128xf32>
    %c0_14 = arith.constant 0 : index
    %c0_15 = arith.constant 0 : index
    %13 = vector.load %arg4[%c0_14, %c0_15] : memref<1x128xf32, #tpu.memory_space<vmem>>, vector<1x128xf32>
    %14 = vector.broadcast %13 : vector<1x128xf32> to vector<8x128xf32>
    %15 = arith.mulf %7, %14 : vector<8x128xf32>
    %16 = arith.addf %2, %15 : vector<8x128xf32>
    %17 = vector.broadcast %12 : vector<1x128xf32> to vector<8x128xf32>
    %18 = arith.addf %16, %17 : vector<8x128xf32>
    %c0_16 = arith.constant 0 : index
    %c0_17 = arith.constant 0 : index
    %19 = vector.load %arg8[%c0_16, %c0_17] : memref<8x128xf32, #tpu.memory_space<vmem>>, vector<8x128xf32>
    tpu.vector_store %arg8[%c0_16, %c0_17], %18 {strides = array<i32>} : memref<8x128xf32, #tpu.memory_space<vmem>>, vector<8x128xf32>,
    return
  }
}

</mosaic_0001>

<llo_original>
// kernel: noisy_linear_forward.1
$region0: #{noisy_linear_forward.1}
  #allocation0 [shape = 'u32[]', space=smem, size = 0x4, offset = 0x4, fixed_abs, tag = 'smem constant byte address 0x4 - core index']
  #allocation1 [shape = 'u32[144,128]{1,0:T(1,128)}', space=vmem, size = 0x12000, scoped, tag = 'internal scratch']
  %s0 = inlined_call_operand.vmem [shape: f32[8,128], index: 0, kind: input, shape index: {}]
  %s1 = inlined_call_operand.hbm [shape: f32[128,128], index: 1, kind: input, shape index: {}]
  %s2 = inlined_call_operand.hbm [shape: f32[128,128], index: 2, kind: input, shape index: {}]
  %s3 = inlined_call_operand.vmem [shape: f32[1,128], index: 3, kind: input, shape index: {}]
  %s4 = inlined_call_operand.vmem [shape: f32[1,128], index: 4, kind: input, shape index: {}]
  %s5 = inlined_call_operand.vmem [shape: f32[1,128], index: 5, kind: input, shape index: {}]
  %s6 = inlined_call_operand.vmem [shape: f32[1,128], index: 6, kind: input, shape index: {}]
  %s7 = inlined_call_operand.vmem [shape: f32[1,128], index: 7, kind: input, shape index: {}]
  %s8 = inlined_call_operand.vmem [shape: f32[8,128], index: 8, kind: output, shape index: {}]
  %s9 = sld [smem:[#allocation0]]
  $region50: #{noisy_linear_forward.1} parent=0
    _
  %s11 = ssub.s32 1, %s9
  %s12 = scalar_select 0, %s11, %s9
  $region1: #{noisy_linear_forward.1} parent=0
    #allocation2 [shape = 'u8[65536]{0}', space=vmem, size = 0x10000, scoped, tag = 'input window, operand 1, single buffered']
    #allocation3 [shape = 's32[1]{0}', space=sflag, size = 0x4, scoped, tag = 'scoped memory for noisy_linear_forward.1']
    #allocation4 [shape = 'u8[65536]{0}', space=vmem, size = 0x10000, scoped, tag = 'input window, operand 2, single buffered']
    #allocation5 [shape = 's32[1]{0}', space=sflag, size = 0x4, scoped, tag = 'scoped memory for noisy_linear_forward.1']
    %13 = vsyncpa [#allocation3], 0
    %14 = vsyncpa [#allocation5], 0
    // Predicated region
    $region2: #{noisy_linear_forward.1} parent=1 // pred_check
      _
    $region3: #{noisy_linear_forward.1} parent=1 // pred_check_branch
      %16 = sbr.rel (0) target = $region5
    $region4: #{noisy_linear_forward.1} parent=1 // pred_region
      _
    $region5: #{noisy_linear_forward.1} parent=1 // pred_fallthru
      _
    // Predicated region
    $region6: #{noisy_linear_forward.1} parent=1 // pred_check
      _
    $region7: #{noisy_linear_forward.1} parent=1 // pred_check_branch
      %18 = sbr.rel (0) target = $region9
    $region8: #{noisy_linear_forward.1} parent=1 // pred_region
      %s20 = ssub.s32 2048, 2048
      %21 = vsyncadd [#allocation3], %s20
      %s22 = sshll.u32 [#allocation2], 4
      %s23 = int_to_ptr.vmem [resolvable:$true] %s22
      %28 = dma.hbm_to_vmem [thread:$0]  %s1, 2048, %s23, [#allocation3], 128, 128, 8
    $region9: #{noisy_linear_forward.1} parent=1 // pred_fallthru
      _
    // Predicated region
    $region10: #{noisy_linear_forward.1} parent=1 // pred_check
      _
    $region11: #{noisy_linear_forward.1} parent=1 // pred_check_branch
      %30 = sbr.rel (0) target = $region13
    $region12: #{noisy_linear_forward.1} parent=1 // pred_region
      %s32 = ssub.s32 2048, 2048
      %33 = vsyncadd [#allocation5], %s32
      %s34 = sshll.u32 [#allocation4], 4
      %s35 = int_to_ptr.vmem [resolvable:$true] %s34
      %40 = dma.hbm_to_vmem [thread:$0]  %s2, 2048, %s35, [#allocation5], 128, 128, 8
    $region13: #{noisy_linear_forward.1} parent=1 // pred_fallthru
      _
    // Predicated region
    $region14: #{noisy_linear_forward.1} parent=1 // pred_check
      _
    $region15: #{noisy_linear_forward.1} parent=1 // pred_check_branch
      %42 = sbr.rel (0) target = $region17
    $region16: #{noisy_linear_forward.1} parent=1 // pred_region
      _
    $region17: #{noisy_linear_forward.1} parent=1 // pred_fallthru
      _
    // Predicated region
    $region18: #{noisy_linear_forward.1} parent=1 // pred_check
      _
    $region19: #{noisy_linear_forward.1} parent=1 // pred_check_branch
      %44 = sbr.rel (0) target = $region21
    $region20: #{noisy_linear_forward.1} parent=1 // pred_region
      _
    $region21: #{noisy_linear_forward.1} parent=1 // pred_fallthru
      _
    // Predicated region
    $region22: #{noisy_linear_forward.1} parent=1 // pred_check
      _
    $region23: #{noisy_linear_forward.1} parent=1 // pred_check_branch
      %46 = sbr.rel (0) target = $region25
    $region24: #{noisy_linear_forward.1} parent=1 // pred_region
      _
    $region25: #{noisy_linear_forward.1} parent=1 // pred_fallthru
      _
    // Predicated region
    $region26: #{noisy_linear_forward.1} parent=1 // pred_check
      _
    $region27: #{noisy_linear_forward.1} parent=1 // pred_check_branch
      %48 = sbr.rel (0) target = $region29
    $region28: #{noisy_linear_forward.1} parent=1 // pred_region
      _
    $region29: #{noisy_linear_forward.1} parent=1 // pred_fallthru
      _
    // Predicated region
    $region30: #{noisy_linear_forward.1} parent=1 // pred_check
      _
    $region31: #{noisy_linear_forward.1} parent=1 // pred_check_branch
      %50 = sbr.rel (0) target = $region33
    $region32: #{noisy_linear_forward.1} parent=1 // pred_region
      _
    $region33: #{noisy_linear_forward.1} parent=1 // pred_fallthru
      _
    // Predicated region
    $region34: #{noisy_linear_forward.1} parent=1 // pred_check
      _
    $region35: #{noisy_linear_forward.1} parent=1 // pred_check_branch
      %52 = sbr.rel (0) target = $region37
    $region36: #{noisy_linear_forward.1} parent=1 // pred_region
      %53 = dma.done [#allocation3], 2048
    $region37: #{noisy_linear_forward.1} parent=1 // pred_fallthru
      _
    // Predicated region
    $region38: #{noisy_linear_forward.1} parent=1 // pred_check
      _
    $region39: #{noisy_linear_forward.1} parent=1 // pred_check_branch
      %55 = sbr.rel (0) target = $region41
    $region40: #{noisy_linear_forward.1} parent=1 // pred_region
      %56 = dma.done [#allocation5], 2048
    $region41: #{noisy_linear_forward.1} parent=1 // pred_fallthru
      _
    %v57 = vld [vmem:[%s0] sm:$0xff]
    %v58 = vld [vmem:[#allocation2] sm:$0xff]
    %v59 = vld [vmem:[#allocation2 + $0x8] sm:$0xff]
    %v60 = vld [vmem:[#allocation2 + $0x10] sm:$0xff]
    %v61 = vld [vmem:[#allocation2 + $0x18] sm:$0xff]
    %v62 = vld [vmem:[#allocation2 + $0x20] sm:$0xff]
    %v63 = vld [vmem:[#allocation2 + $0x28] sm:$0xff]
    %v64 = vld [vmem:[#allocation2 + $0x30] sm:$0xff]
    %v65 = vld [vmem:[#allocation2 + $0x38] sm:$0xff]
    %v66 = vld [vmem:[#allocation2 + $0x40] sm:$0xff]
    %v67 = vld [vmem:[#allocation2 + $0x48] sm:$0xff]
    %v68 = vld [vmem:[#allocation2 + $0x50] sm:$0xff]
    %v69 = vld [vmem:[#allocation2 + $0x58] sm:$0xff]
    %v70 = vld [vmem:[#allocation2 + $0x60] sm:$0xff]
    %v71 = vld [vmem:[#allocation2 + $0x68] sm:$0xff]
    %v72 = vld [vmem:[#allocation2 + $0x70] sm:$0xff]
    %v73 = vld [vmem:[#allocation2 + $0x78] sm:$0xff]
    %v74 = vld [vmem:[%s3] sm:$0x1]
    %v76 = vlaneseq
    %v77 = vshrl.u32 %v76, 7
    %v78 = vsub.s32 0, %v77
    %v79 = vrot.slane %v74, %v78
    %v81 = vmul.f32 %v57, %v79
    %v82 = vld [vmem:[#allocation4] sm:$0xff]
    %v83 = vld [vmem:[#allocation4 + $0x8] sm:$0xff]
    %v84 = vld [vmem:[#allocation4 + $0x10] sm:$0xff]
    %v85 = vld [vmem:[#allocation4 + $0x18] sm:$0xff]
    %v86 = vld [vmem:[#allocation4 + $0x20] sm:$0xff]
    %v87 = vld [vmem:[#allocation4 + $0x28] sm:$0xff]
    %v88 = vld [vmem:[#allocation4 + $0x30] sm:$0xff]
    %v89 = vld [vmem:[#allocation4 + $0x38] sm:$0xff]
    %v90 = vld [vmem:[#allocation4 + $0x40] sm:$0xff]
    %v91 = vld [vmem:[#allocation4 + $0x48] sm:$0xff]
    %v92 = vld [vmem:[#allocation4 + $0x50] sm:$0xff]
    %v93 = vld [vmem:[#allocation4 + $0x58] sm:$0xff]
    %v94 = vld [vmem:[#allocation4 + $0x60] sm:$0xff]
    %v95 = vld [vmem:[#allocation4 + $0x68] sm:$0xff]
    %v96 = vld [vmem:[#allocation4 + $0x70] sm:$0xff]
    %v97 = vld [vmem:[#allocation4 + $0x78] sm:$0xff]
    %98 = vmatprep.subr.mxu0 0.0
    %99 = vmatpush1.msra.mxu0 %v82
    %100 = vmatprep.subr.mxu0 0.0
    %101 = vmatpush1.msra.mxu0 %v83
    %102 = vmatprep.subr.mxu0 0.0
    %103 = vmatpush1.msra.mxu0 %v84
    %104 = vmatprep.subr.mxu0 0.0
    %105 = vmatpush1.msra.mxu0 %v85
    %106 = vmatprep.subr.mxu0 0.0
    %107 = vmatpush1.msra.mxu0 %v86
    %108 = vmatprep.subr.mxu0 0.0
    %109 = vmatpush1.msra.mxu0 %v87
    %110 = vmatprep.subr.mxu0 0.0
    %111 = vmatpush1.msra.mxu0 %v88
    %112 = vmatprep.subr.mxu0 0.0
    %113 = vmatpush1.msra.mxu0 %v89
    %114 = vmatprep.subr.mxu0 0.0
    %115 = vmatpush1.msra.mxu0 %v90
    %116 = vmatprep.subr.mxu0 0.0
    %117 = vmatpush1.msra.mxu0 %v91
    %118 = vmatprep.subr.mxu0 0.0
    %119 = vmatpush1.msra.mxu0 %v92
    %120 = vmatprep.subr.mxu0 0.0
    %121 = vmatpush1.msra.mxu0 %v93
    %122 = vmatprep.subr.mxu0 0.0
    %123 = vmatpush1.msra.mxu0 %v94
    %124 = vmatprep.subr.mxu0 0.0
    %125 = vmatpush1.msra.mxu0 %v95
    %126 = vmatprep.subr.mxu0 0.0
    %127 = vmatpush1.msra.mxu0 %v96
    %128 = vmatprep.subr.mxu0 0.0
    %129 = vmatpush1.msra.mxu0 %v97
    %130 = vmatprep.subr.mxu0 0.0
    %131 = vmatpush1.msra.mxu0 0.0
    %132 = vmatprep.subr.mxu0 0.0
    %133 = vmatpush1.msra.mxu0 0.0
    %134 = vmatprep.subr.mxu0 0.0
    %135 = vmatpush1.msra.mxu0 0.0
    %136 = vmatprep.subr.mxu0 0.0
    %137 = vmatpush1.msra.mxu0 0.0
    %138 = vmatprep.subr.mxu0 0.0
    %139 = vmatpush1.msra.mxu0 0.0
    %140 = vmatprep.subr.mxu0 0.0
    %141 = vmatpush1.msra.mxu0 0.0
    %142 = vmatprep.subr.mxu0 0.0
    %143 = vmatpush1.msra.mxu0 0.0
    %144 = vmatprep.subr.mxu0 0.0
    %145 = vmatpush1.msra.mxu0 0.0
    %146 = vmatprep.subr.mxu0 0.0
    %147 = vmatpush1.msra.mxu0 0.0
    %148 = vmatprep.subr.mxu0 0.0
    %149 = vmatpush1.msra.mxu0 0.0
    %150 = vmatprep.subr.mxu0 0.0
    %151 = vmatpush1.msra.mxu0 0.0
    %152 = vmatprep.subr.mxu0 0.0
    %153 = vmatpush1.msra.mxu0 0.0
    %154 = vmatprep.subr.mxu0 0.0
    %155 = vmatpush1.msra.mxu0 0.0
    %156 = vmatprep.subr.mxu0 0.0
    %157 = vmatpush1.msra.mxu0 0.0
    %158 = vmatprep.subr.mxu0 0.0
    %159 = vmatpush1.msra.mxu0 0.0
    %160 = vmatprep.subr.mxu0 0.0
    %161 = vmatpush1.msra.mxu0 0.0
    %162 = vmatprep.mubr.f32.mxu0 0.0
    %163 = vmatmul.mubr.f32.gmra.mrb[0].mxu0 %v81
    %v164 = vpop.f32.mrb[0].mxu0
    %v165 = vadd.f32 0.0, %v164
    %v166 = vpop.f32.mrb[0].mxu0
    %167 = vdwg.mxu0
    %v168 = vld [vmem:[%s5] sm:$0x1]
    %v169 = vld [vmem:[%s6] sm:$0x1]
    %v170 = vld [vmem:[%s7] sm:$0x1]
    %v171 = vmul.f32 %v169, %v170
    %v172 = vadd.f32 %v168, %v171
    %v173 = vld [vmem:[%s4] sm:$0x1]
    %v175 = vlaneseq
    %v176 = vshrl.u32 %v175, 7
    %v177 = vsub.s32 0, %v176
    %v178 = vrot.slane %v173, %v177
    %v180 = vmul.f32 %v165, %v178
    %181 = vmatprep.subr.mxu0 0.0
    %182 = vmatpush1.msra.mxu0 %v58
    %183 = vmatprep.subr.mxu0 0.0
    %184 = vmatpush1.msra.mxu0 %v59
    %185 = vmatprep.subr.mxu0 0.0
    %186 = vmatpush1.msra.mxu0 %v60
    %187 = vmatprep.subr.mxu0 0.0
    %188 = vmatpush1.msra.mxu0 %v61
    %189 = vmatprep.subr.mxu0 0.0
    %190 = vmatpush1.msra.mxu0 %v62
    %191 = vmatprep.subr.mxu0 0.0
    %192 = vmatpush1.msra.mxu0 %v63
    %193 = vmatprep.subr.mxu0 0.0
    %194 = vmatpush1.msra.mxu0 %v64
    %195 = vmatprep.subr.mxu0 0.0
    %196 = vmatpush1.msra.mxu0 %v65
    %197 = vmatprep.subr.mxu0 0.0
    %198 = vmatpush1.msra.mxu0 %v66
    %199 = vmatprep.subr.mxu0 0.0
    %200 = vmatpush1.msra.mxu0 %v67
    %201 = vmatprep.subr.mxu0 0.0
    %202 = vmatpush1.msra.mxu0 %v68
    %203 = vmatprep.subr.mxu0 0.0
    %204 = vmatpush1.msra.mxu0 %v69
    %205 = vmatprep.subr.mxu0 0.0
    %206 = vmatpush1.msra.mxu0 %v70
    %207 = vmatprep.subr.mxu0 0.0
    %208 = vmatpush1.msra.mxu0 %v71
    %209 = vmatprep.subr.mxu0 0.0
    %210 = vmatpush1.msra.mxu0 %v72
    %211 = vmatprep.subr.mxu0 0.0
    %212 = vmatpush1.msra.mxu0 %v73
    %213 = vmatprep.subr.mxu0 0.0
    %214 = vmatpush1.msra.mxu0 0.0
    %215 = vmatprep.subr.mxu0 0.0
    %216 = vmatpush1.msra.mxu0 0.0
    %217 = vmatprep.subr.mxu0 0.0
    %218 = vmatpush1.msra.mxu0 0.0
    %219 = vmatprep.subr.mxu0 0.0
    %220 = vmatpush1.msra.mxu0 0.0
    %221 = vmatprep.subr.mxu0 0.0
    %222 = vmatpush1.msra.mxu0 0.0
    %223 = vmatprep.subr.mxu0 0.0
    %224 = vmatpush1.msra.mxu0 0.0
    %225 = vmatprep.subr.mxu0 0.0
    %226 = vmatpush1.msra.mxu0 0.0
    %227 = vmatprep.subr.mxu0 0.0
    %228 = vmatpush1.msra.mxu0 0.0
    %229 = vmatprep.subr.mxu0 0.0
    %230 = vmatpush1.msra.mxu0 0.0
    %231 = vmatprep.subr.mxu0 0.0
    %232 = vmatpush1.msra.mxu0 0.0
    %233 = vmatprep.subr.mxu0 0.0
    %234 = vmatpush1.msra.mxu0 0.0
    %235 = vmatprep.subr.mxu0 0.0
    %236 = vmatpush1.msra.mxu0 0.0
    %237 = vmatprep.subr.mxu0 0.0
    %238 = vmatpush1.msra.mxu0 0.0
    %239 = vmatprep.subr.mxu0 0.0
    %240 = vmatpush1.msra.mxu0 0.0
    %241 = vmatprep.subr.mxu0 0.0
    %242 = vmatpush1.msra.mxu0 0.0
    %243 = vmatprep.subr.mxu0 0.0
    %244 = vmatpush1.msra.mxu0 0.0
    %245 = vmatprep.mubr.f32.mxu0 0.0
    %246 = vmatmul.mubr.f32.gmra.mrb[0].mxu0 %v57
    %v247 = vpop.f32.mrb[0].mxu0
    %v248 = vadd.f32 %v180, %v247
    %v249 = vpop.f32.mrb[0].mxu0
    %250 = vdwg.mxu0
    %v252 = vlaneseq
    %v253 = vshrl.u32 %v252, 7
    %v254 = vsub.s32 0, %v253
    %v255 = vrot.slane %v172, %v254
    %v257 = vadd.f32 %v248, %v255
    %258 = vst [vmem:[%s8] sm:$0xff] %v257
    // Predicated region
    $region42: #{noisy_linear_forward.1} parent=1 // pred_check
      _
    $region43: #{noisy_linear_forward.1} parent=1 // pred_check_branch
      %260 = sbr.rel (0) target = $region45
    $region44: #{noisy_linear_forward.1} parent=1 // pred_region
      _
    $region45: #{noisy_linear_forward.1} parent=1 // pred_fallthru
      _
    // Predicated region
    $region46: #{noisy_linear_forward.1} parent=1 // pred_check
      _
    $region47: #{noisy_linear_forward.1} parent=1 // pred_check_branch
      %262 = sbr.rel (0) target = $region49
    $region48: #{noisy_linear_forward.1} parent=1 // pred_region
      _
    $region49: #{noisy_linear_forward.1} parent=1 // pred_fallthru
      _
    %263 = vsyncpa [#allocation3], 1
    %264 = vsyncpa [#allocation5], 1

</llo_original>
